<compile_context>
chip_gen: v7x
topology: tpu7x:2x2x1
jax: 0.10.0
libtpu: 0.0.40
codegen_flags: <defaults>
</compile_context>

<pallas_src>
import jax
import jax.numpy as jnp
from jax import lax
from jax.experimental import pallas as pl
from jax.experimental.pallas import tpu as pltpu

GAMMA = 1.5
ALPHA = 0.25
_LANES = 128


def _make_focal_kernel(block_rows, full_rows, rem_lanes, apply_mask):
    """Build the per-block kernel. All closure args are Python ints/bools."""

    def kernel(pred_ref, true_ref, out_ref):
        x = pred_ref[...].astype(jnp.float32)
        y = true_ref[...].astype(jnp.float32)

        # One EUP tanh supplies both the sigmoid and the stable softplus term:
        #   sigmoid(x)       = 0.5 * (1 + tanh(x/2))
        #   log1p(exp(-|x|)) = -log(sigmoid(|x|)) = -log(0.5 * (1 + |tanh(x/2)|))
        t = jnp.tanh(0.5 * x)
        pred_prob = 0.5 + 0.5 * t
        bce = jnp.maximum(x, 0.0) - x * y - jnp.log(0.5 + 0.5 * jnp.abs(t))

        p_t = y * pred_prob + (1.0 - y) * (1.0 - pred_prob)
        alpha_factor = y * ALPHA + (1.0 - y) * (1.0 - ALPHA)
        z = jnp.maximum(1.0 - p_t, 0.0)
        modulating_factor = z * jnp.sqrt(z)          # (1 - p_t) ** 1.5 (gamma = 1.5)
        loss = bce * alpha_factor * modulating_factor

        if apply_mask:
            # Edge-block rows past the real data (and lane-pad in the last real
            # row) are zeroed BEFORE the reduction. Row/lane comparison avoids
            # any 32-bit overflow on the flat element index.
            row = (pl.program_id(0) * block_rows
                   + lax.broadcasted_iota(jnp.int32, loss.shape, 0))
            valid = row < full_rows
            if rem_lanes:
                lane = lax.broadcasted_iota(jnp.int32, loss.shape, 1)
                valid = valid | ((row == full_rows) & (lane < rem_lanes))
            loss = jnp.where(valid, loss, 0.0)

        # Per-lane partial sums for this block -> lane-dense (1, 128) tile.
        out_ref[...] = jnp.sum(loss, axis=0, keepdims=True)

    return kernel


def focal_loss(pred, true, *, target_block_bytes=2 << 20):
    """Mean focal loss (gamma=1.5, alpha=0.25) over BCEWithLogitsLoss.

    `pred`/`true` may be any matching shape; they are streamed in their storage
    dtype (do NOT cast labels in the caller -- that adds a full HBM pass) and
    upcast to f32 inside the kernel.
    """
    assert pred.shape == true.shape
    total = pred.size
    lanes = _LANES

    rows = pl.cdiv(total, lanes)            # rows of the (rows, 128) logical slab
    full_rows, rem_lanes = divmod(total, lanes)

    p_item = jnp.dtype(pred.dtype).itemsize
    t_item = jnp.dtype(true.dtype).itemsize

    # --- block sizing: by bytes of the pred stream (~2 MiB / input block) ----
    block_rows = max(8, (target_block_bytes // (lanes * p_item) // 8) * 8)
    # Megacore guard (v7x: 2 TCs): keep >= 4 blocks when the problem allows,
    # but never shrink below ~1 MiB of pred bytes per block.
    floor_rows = max(512, (1 << 20) // (lanes * p_item))
    while block_rows > floor_rows and pl.cdiv(rows, block_rows) < 4:
        block_rows //= 2
    # Never larger than the (8-rounded) problem itself.
    block_rows = min(block_rows, ((rows + 7) // 8) * 8)
    block_rows = max(8, (block_rows // 8) * 8)

    n_blocks = pl.cdiv(rows, block_rows)

    # --- wrapper-side data prep: only a <=127-element pad, never a full slab --
    pred_flat = pred.reshape(-1)
    true_flat = true.reshape(-1)
    if rem_lanes:
        pad = lanes - rem_lanes
        pred_flat = jnp.pad(pred_flat, (0, pad))
        true_flat = jnp.pad(true_flat, (0, pad))
    pred2d = pred_flat.reshape(rows, lanes)
    true2d = true_flat.reshape(rows, lanes)

    # Mask only when something (lane pad or block-level ragged edge) needs it.
    apply_mask = bool(rem_lanes) or (rows % block_rows != 0)
    kernel = _make_focal_kernel(block_rows, full_rows, rem_lanes, apply_mask)

    # Scoped-VMEM budget: double-buffered inputs + room for f32 temporaries.
    # Keeps large blocks compiling on v5e (16 MiB default) while staying well
    # under v7x's 64 MiB physical VMEM.
    io_bytes = 2 * block_rows * lanes * (p_item + t_item)
    tmp_bytes = 8 * block_rows * lanes * 4
    vmem_limit = int(min(max(io_bytes + tmp_bytes + (1 << 20), 32 << 20), 48 << 20))

    partials = pl.pallas_call(
        kernel,
        out_shape=jax.ShapeDtypeStruct((n_blocks, lanes), jnp.float32),
        grid_spec=pltpu.PrefetchScalarGridSpec(
            num_scalar_prefetch=0,
            grid=(n_blocks,),
            in_specs=[
                pl.BlockSpec((block_rows, lanes), lambda i: (i, 0)),
                pl.BlockSpec((block_rows, lanes), lambda i: (i, 0)),
            ],
            out_specs=pl.BlockSpec((1, lanes), lambda i: (i, 0)),
        ),
        compiler_params=pltpu.CompilerParams(
            dimension_semantics=("parallel",),   # independent blocks -> megacore
            vmem_limit_bytes=vmem_limit,
        ),
    )(pred2d, true2d)

    # reduction == 'mean' over the true (unpadded) element count.
    return jnp.sum(partials) / jnp.float32(total)


def _reference(pred, true):
    x = pred.astype(jnp.float32)
    y = true.astype(jnp.float32)
    bce = jnp.maximum(x, 0.0) - x * y + jnp.log1p(jnp.exp(-jnp.abs(x)))
    p = jax.nn.sigmoid(x)
    p_t = y * p + (1.0 - y) * (1.0 - p)
    af = y * ALPHA + (1.0 - y) * (1.0 - ALPHA)
    mf = (1.0 - p_t) ** GAMMA
    return jnp.mean(bce * af * mf)


if __name__ == "__main__":
    key = jax.random.PRNGKey(0)
    k1, k2, k3, k4 = jax.random.split(key, 4)

    # NCHW: batch=2, channels=4, spatial=16x16 (total is a multiple of 128 ->
    # no padding, no masking path).
    pred = jax.random.normal(k1, (2, 4, 16, 16), dtype=jnp.float32) * 2.0
    true = (jax.random.uniform(k2, (2, 4, 16, 16)) > 0.5).astype(jnp.float32)
    out = jax.block_until_ready(focal_loss(pred, true))
    ref = _reference(pred, true)
    assert jnp.allclose(out, ref, rtol=1e-4, atol=1e-5), (out, ref)

    # Ragged bf16 case (exercises the lane pad + in-kernel mask path).
    pred_b = (jax.random.normal(k3, (2, 3, 17, 19), dtype=jnp.float32) * 2.0).astype(jnp.bfloat16)
    true_b = (jax.random.uniform(k4, (2, 3, 17, 19)) > 0.5).astype(jnp.bfloat16)
    out_b = jax.block_until_ready(focal_loss(pred_b, true_b))
    ref_b = _reference(pred_b, true_b)
    assert jnp.allclose(out_b, ref_b, rtol=1e-4, atol=1e-5), (out_b, ref_b)

    # TODO(synk): only reduction='mean' is implemented (the module's default);
    # 'sum'/'none' would just change the wrapper-side reduction.
    print("KERNEL_OK")
</pallas_src>

<mosaic_0001>
module attributes {stable_mosaic.version = 11 : i64} {
  func.func @kernel(%arg0: i32, %arg1: memref<16x128xf32, #tpu.memory_space<vmem>>, %arg2: memref<16x128xf32, #tpu.memory_space<vmem>>, %arg3: memref<1x128xf32, #tpu.memory_space<vmem>>) attributes {dimension_semantics = [#tpu.dimension_semantics<parallel>], iteration_bounds = array<i64: 1>, scalar_prefetch = 0 : i64, scratch_operands = 0 : i64, tpu.core_type = #tpu.core_type<tc>, window_params = [{transform_indices = @transform_0, window_bounds = array<i64: 16, 128>}, {transform_indices = @transform_1, window_bounds = array<i64: 16, 128>}, {transform_indices = @transform_2, window_bounds = array<i64: 1, 128>}]} {
    %c0 = arith.constant 0 : index
    %c0_0 = arith.constant 0 : index
    %0 = vector.load %arg1[%c0, %c0_0] : memref<16x128xf32, #tpu.memory_space<vmem>>, vector<16x128xf32>
    %c0_1 = arith.constant 0 : index
    %c0_2 = arith.constant 0 : index
    %1 = vector.load %arg2[%c0_1, %c0_2] : memref<16x128xf32, #tpu.memory_space<vmem>>, vector<16x128xf32>
    %cst = arith.constant 5.000000e-01 : f32
    %2 = vector.broadcast %cst : f32 to vector<16x128xf32>
    %3 = arith.mulf %2, %0 : vector<16x128xf32>
    %4 = math.tanh %3 : vector<16x128xf32>
    %cst_3 = arith.constant 5.000000e-01 : f32
    %5 = vector.broadcast %cst_3 : f32 to vector<16x128xf32>
    %6 = arith.mulf %5, %4 : vector<16x128xf32>
    %cst_4 = arith.constant 5.000000e-01 : f32
    %7 = vector.broadcast %cst_4 : f32 to vector<16x128xf32>
    %8 = arith.addf %7, %6 : vector<16x128xf32>
    %cst_5 = arith.constant 0.000000e+00 : f32
    %9 = vector.broadcast %cst_5 : f32 to vector<16x128xf32>
    %10 = arith.maximumf %0, %9 : vector<16x128xf32>
    %11 = arith.mulf %0, %1 : vector<16x128xf32>
    %12 = arith.subf %10, %11 : vector<16x128xf32>
    %13 = math.absf %4 : vector<16x128xf32>
    %cst_6 = arith.constant 5.000000e-01 : f32
    %14 = vector.broadcast %cst_6 : f32 to vector<16x128xf32>
    %15 = arith.mulf %14, %13 : vector<16x128xf32>
    %cst_7 = arith.constant 5.000000e-01 : f32
    %16 = vector.broadcast %cst_7 : f32 to vector<16x128xf32>
    %17 = arith.addf %16, %15 : vector<16x128xf32>
    %18 = math.log %17 : vector<16x128xf32>
    %19 = arith.subf %12, %18 : vector<16x128xf32>
    %20 = arith.mulf %1, %8 : vector<16x128xf32>
    %cst_8 = arith.constant 1.000000e+00 : f32
    %21 = vector.broadcast %cst_8 : f32 to vector<16x128xf32>
    %22 = arith.subf %21, %1 : vector<16x128xf32>
    %cst_9 = arith.constant 1.000000e+00 : f32
    %23 = vector.broadcast %cst_9 : f32 to vector<16x128xf32>
    %24 = arith.subf %23, %8 : vector<16x128xf32>
    %25 = arith.mulf %22, %24 : vector<16x128xf32>
    %26 = arith.addf %20, %25 : vector<16x128xf32>
    %cst_10 = arith.constant 2.500000e-01 : f32
    %27 = vector.broadcast %cst_10 : f32 to vector<16x128xf32>
    %28 = arith.mulf %1, %27 : vector<16x128xf32>
    %cst_11 = arith.constant 1.000000e+00 : f32
    %29 = vector.broadcast %cst_11 : f32 to vector<16x128xf32>
    %30 = arith.subf %29, %1 : vector<16x128xf32>
    %cst_12 = arith.constant 7.500000e-01 : f32
    %31 = vector.broadcast %cst_12 : f32 to vector<16x128xf32>
    %32 = arith.mulf %30, %31 : vector<16x128xf32>
    %33 = arith.addf %28, %32 : vector<16x128xf32>
    %cst_13 = arith.constant 1.000000e+00 : f32
    %34 = vector.broadcast %cst_13 : f32 to vector<16x128xf32>
    %35 = arith.subf %34, %26 : vector<16x128xf32>
    %cst_14 = arith.constant 0.000000e+00 : f32
    %36 = vector.broadcast %cst_14 : f32 to vector<16x128xf32>
    %37 = arith.maximumf %35, %36 : vector<16x128xf32>
    %38 = math.sqrt %37 : vector<16x128xf32>
    %39 = arith.mulf %37, %38 : vector<16x128xf32>
    %40 = arith.mulf %19, %33 : vector<16x128xf32>
    %41 = arith.mulf %40, %39 : vector<16x128xf32>
    %cst_15 = arith.constant dense<0.000000e+00> : vector<128xf32>
    %42 = vector.multi_reduction <add>, %41, %cst_15 [0] : vector<16x128xf32> to vector<128xf32>
    %43 = vector.shape_cast %42 : vector<128xf32> to vector<1x128xf32>
    %c0_16 = arith.constant 0 : index
    %c0_17 = arith.constant 0 : index
    %44 = vector.load %arg3[%c0_16, %c0_17] : memref<1x128xf32, #tpu.memory_space<vmem>>, vector<1x128xf32>
    tpu.vector_store %arg3[%c0_16, %c0_17], %43 {strides = array<i32>} : memref<1x128xf32, #tpu.memory_space<vmem>>, vector<1x128xf32>,
    return
  }
  func.func @transform_0(%arg0: i32) -> (i32, i32) {
    %c0_i32 = arith.constant 0 : i32
    %c0_i32_0 = arith.constant 0 : i32
    return %arg0, %c0_i32 : i32, i32
  }
  func.func @transform_1(%arg0: i32) -> (i32, i32) {
    %c0_i32 = arith.constant 0 : i32
    %c0_i32_0 = arith.constant 0 : i32
    return %arg0, %c0_i32 : i32, i32
  }
  func.func @transform_2(%arg0: i32) -> (i32, i32) {
    %c0_i32 = arith.constant 0 : i32
    %c0_i32_0 = arith.constant 0 : i32
    return %arg0, %c0_i32 : i32, i32
  }
}

</mosaic_0001>

<llo_original>
// kernel: tpu_custom_call.1
$region0: #{tpu_custom_call.1}
  #allocation0 [shape = 'u32[]', space=smem, size = 0x4, offset = 0x4, fixed_abs, tag = 'smem constant byte address 0x4 - core index']
  #allocation1 [shape = 'u32[144,128]{1,0:T(1,128)}', space=vmem, size = 0x12000, scoped, tag = 'internal scratch']
  %s0 = inlined_call_operand.hbm [shape: f32[16,128], index: 0, kind: input, shape index: {}]
  %s1 = inlined_call_operand.hbm [shape: f32[16,128], index: 1, kind: input, shape index: {}]
  %s2 = inlined_call_operand.hbm [shape: f32[1,128], index: 2, kind: output, shape index: {}]
  %s3 = sld [smem:[#allocation0]]
  $region26: #{tpu_custom_call.1} parent=0
    _
  %s5 = ssub.s32 1, %s3
  %s6 = scalar_select 0, %s5, %s3
  $region1: #{tpu_custom_call.1} parent=0
    #allocation2 [shape = 'u8[8192]{0}', space=vmem, size = 0x2000, scoped, tag = 'input window, operand 0, single buffered']
    #allocation3 [shape = 's32[1]{0}', space=sflag, size = 0x4, scoped, tag = 'scoped memory for tpu_custom_call.1']
    #allocation4 [shape = 's32[1]{0}', space=sflag, size = 0x4, scoped, tag = 'scoped memory for tpu_custom_call.1']
    #allocation5 [shape = 'u8[8192]{0}', space=vmem, size = 0x2000, scoped, tag = 'input window, operand 1, single buffered']
    #allocation6 [shape = 's32[1]{0}', space=sflag, size = 0x4, scoped, tag = 'scoped memory for tpu_custom_call.1']
    #allocation7 [shape = 'u8[512]{0}', space=vmem, size = 0x400, scoped, tag = 'output window, operand 0, single buffered']
    %7 = vsyncpa [#allocation3], 0
    %8 = vsyncpa [#allocation6], 0
    %9 = vsyncpa [#allocation4], 0
    // Predicated region
    $region2: #{tpu_custom_call.1} parent=1 // pred_check
      _
    $region3: #{tpu_custom_call.1} parent=1 // pred_check_branch
      %11 = sbr.rel (0) target = $region5
    $region4: #{tpu_custom_call.1} parent=1 // pred_region
      %s13 = ssub.s32 256, 256
      %14 = vsyncadd [#allocation3], %s13
      %s15 = sshll.u32 [#allocation2], 4
      %s16 = int_to_ptr.vmem [resolvable:$true] %s15
      %21 = dma.hbm_to_vmem [thread:$0]  %s0, 256, %s16, [#allocation3], 128, 128, 8
    $region5: #{tpu_custom_call.1} parent=1 // pred_fallthru
      _
    // Predicated region
    $region6: #{tpu_custom_call.1} parent=1 // pred_check
      _
    $region7: #{tpu_custom_call.1} parent=1 // pred_check_branch
      %23 = sbr.rel (0) target = $region9
    $region8: #{tpu_custom_call.1} parent=1 // pred_region
      %s25 = ssub.s32 256, 256
      %26 = vsyncadd [#allocation6], %s25
      %s27 = sshll.u32 [#allocation5], 4
      %s28 = int_to_ptr.vmem [resolvable:$true] %s27
      %33 = dma.hbm_to_vmem [thread:$0]  %s1, 256, %s28, [#allocation6], 128, 128, 8
    $region9: #{tpu_custom_call.1} parent=1 // pred_fallthru
      _
    // Predicated region
    $region10: #{tpu_custom_call.1} parent=1 // pred_check
      _
    $region11: #{tpu_custom_call.1} parent=1 // pred_check_branch
      %35 = sbr.rel (0) target = $region13
    $region12: #{tpu_custom_call.1} parent=1 // pred_region
      %36 = dma.done [#allocation3], 256
    $region13: #{tpu_custom_call.1} parent=1 // pred_fallthru
      _
    // Predicated region
    $region14: #{tpu_custom_call.1} parent=1 // pred_check
      _
    $region15: #{tpu_custom_call.1} parent=1 // pred_check_branch
      %38 = sbr.rel (0) target = $region17
    $region16: #{tpu_custom_call.1} parent=1 // pred_region
      %39 = dma.done [#allocation6], 256
    $region17: #{tpu_custom_call.1} parent=1 // pred_fallthru
      _
    %v40 = vld [vmem:[#allocation2] sm:$0xff]
    %v41 = vld [vmem:[#allocation2 + $0x8] sm:$0xff]
    %v42 = vld [vmem:[#allocation5] sm:$0xff]
    %v43 = vld [vmem:[#allocation5 + $0x8] sm:$0xff]
    %v44 = vmul.f32 %v40, 0.5
    %v45 = vmul.f32 %v41, 0.5
    %v46 = vtanh.pop %v44
    %v47 = vtanh.pop %v45
    %v48 = vmul.f32 %v46, 0.5
    %v49 = vmul.f32 %v47, 0.5
    %v50 = vadd.f32 %v48, 0.5
    %v51 = vadd.f32 %v49, 0.5
    %v52 = vmax.f32 %v40, 0.0
    %v53 = vmax.f32 %v41, 0.0
    %v54 = vmul.f32 %v40, %v42
    %v55 = vmul.f32 %v41, %v43
    %v56 = vsub.f32 %v52, %v54
    %v57 = vsub.f32 %v53, %v55
    %v58 = vand.u32 2147483647, %v46
    %v59 = vand.u32 2147483647, %v47
    %v60 = vmul.f32 %v58, 0.5
    %v61 = vmul.f32 %v59, 0.5
    %v62 = vadd.f32 %v60, 0.5
    %v63 = vadd.f32 %v61, 0.5
    %v64 = vlog2.pop %v62
    %v65 = vmul.f32 %v64, 0.6931472
    %v66 = vlog2.pop %v63
    %v67 = vmul.f32 %v66, 0.6931472
    %v68 = vsub.f32 %v56, %v65
    %v69 = vsub.f32 %v57, %v67
    %v70 = vmul.f32 %v42, %v50
    %v71 = vmul.f32 %v43, %v51
    %v72 = vsub.f32 1.0, %v42
    %v73 = vsub.f32 1.0, %v43
    %v74 = vsub.f32 1.0, %v50
    %v75 = vsub.f32 1.0, %v51
    %v76 = vmul.f32 %v72, %v74
    %v77 = vmul.f32 %v73, %v75
    %v78 = vadd.f32 %v70, %v76
    %v79 = vadd.f32 %v71, %v77
    %v80 = vmul.f32 %v42, 0.25
    %v81 = vmul.f32 %v43, 0.25
    %v82 = vmul.f32 %v72, 0.75
    %v83 = vmul.f32 %v73, 0.75
    %v84 = vadd.f32 %v80, %v82
    %v85 = vadd.f32 %v81, %v83
    %v86 = vsub.f32 1.0, %v78
    %v87 = vsub.f32 1.0, %v79
    %v88 = vmax.f32 %v86, 0.0
    %v89 = vmax.f32 %v87, 0.0
    %v90 = vrsqrt.pop %v88
    %v91 = vmul.f32 %v88, %v90
    %vm92 = vcmp.eq.f32.partialorder %v88, inf
    %v93 = vsel %vm92, %v88, %v91
    %vm94 = vcmp.eq.f32.partialorder %v88, 0.0
    %v95 = vand.u32 %v88, 2147483648
    %v96 = vsel %vm94, %v95, %v93
    %v97 = vrsqrt.pop %v89
    %v98 = vmul.f32 %v89, %v97
    %vm99 = vcmp.eq.f32.partialorder %v89, inf
    %v100 = vsel %vm99, %v89, %v98
    %vm101 = vcmp.eq.f32.partialorder %v89, 0.0
    %v102 = vand.u32 %v89, 2147483648
    %v103 = vsel %vm101, %v102, %v100
    %v104 = vmul.f32 %v88, %v96
    %v105 = vmul.f32 %v89, %v103
    %v106 = vmul.f32 %v68, %v84
    %v107 = vmul.f32 %v69, %v85
    %v108 = vmul.f32 %v106, %v104
    %v109 = vmul.f32 %v107, %v105
    %v110 = vadd.f32 %v108, %v109
    %v111 = vrot.slane %v110, 4
    %v112 = vadd.f32 %v110, %v111
    %v113 = vrot.slane %v112, 2
    %v114 = vadd.f32 %v112, %v113
    %v115 = vrot.slane %v114, 1
    %v116 = vadd.f32 %v114, %v115
    %117 = vst [vmem:[#allocation7] sm:$0x1] %v116
    // Predicated region
    $region18: #{tpu_custom_call.1} parent=1 // pred_check
      _
    $region19: #{tpu_custom_call.1} parent=1 // pred_check_branch
      %119 = sbr.rel (0) target = $region21
    $region20: #{tpu_custom_call.1} parent=1 // pred_region
      %s121 = ssub.s32 16, 16
      %122 = vsyncadd [#allocation4], %s121
      %s124 = sshll.u32 [#allocation7], 4
      %s125 = int_to_ptr.vmem [resolvable:$true] %s124
      %127 = dma.vmem_to_hbm [thread:$0]  %s125, 16, %s2, [#allocation4]
    $region21: #{tpu_custom_call.1} parent=1 // pred_fallthru
      _
    // Predicated region
    $region22: #{tpu_custom_call.1} parent=1 // pred_check
      _
    $region23: #{tpu_custom_call.1} parent=1 // pred_check_branch
      %129 = sbr.rel (0) target = $region25
    $region24: #{tpu_custom_call.1} parent=1 // pred_region
      %130 = dma.done [#allocation4], 16
    $region25: #{tpu_custom_call.1} parent=1 // pred_fallthru
      _
    %131 = vsyncpa [#allocation3], 1
    %132 = vsyncpa [#allocation6], 1
    %133 = vsyncpa [#allocation4], 1

</llo_original>
